<compile_context>
chip_gen: v7x
topology: tpu7x:2x2x1
jax: 0.10.0
libtpu: 0.0.40
codegen_flags: <defaults>
</compile_context>

<pallas_src>
import functools

import jax
import jax.numpy as jnp
from jax.experimental import pallas as pl
from jax.experimental.pallas import tpu as pltpu

_LANE = 128
_SUB = 8
_MAX_BLOCK_ROWS = 1024  # 1024 x 128 x 4B = 512 KiB per f32 block


def _round_up(a, b):
    return (a + b - 1) // b * b


def _plan(n):
    """Pick (total_rows, block_rows) for a flat length-n tensor."""
    rows0 = max(-(-n // _LANE), 1)
    if rows0 <= _MAX_BLOCK_ROWS:
        block_rows = _round_up(rows0, _SUB)      # single big block
    else:
        block_rows = _MAX_BLOCK_ROWS
    rows = _round_up(rows0, block_rows)
    return rows, block_rows


# ----------------------------------------------------------------------------
# Kernel 1: global max of relu(x)
#   grid = (num_splits [parallel], tiles_per_split [arbitrary])
#   output block (1, 8, 128) is resident across the arbitrary axis and acts
#   as a pure-VPU elementwise accumulator; no per-step cross-lane reduce.
# ----------------------------------------------------------------------------
def _max_relu_kernel(x_ref, o_ref):
    @pl.when(pl.program_id(1) == 0)
    def _():
        # NOTE: 0 is only a safe init because the reduction is over relu(x) >= 0
        # (also makes zero-padding of the tail harmless).
        o_ref[...] = jnp.zeros_like(o_ref)

    x = x_ref[...].astype(jnp.float32)            # upcast in VMEM (bf16 inputs)
    r = jnp.maximum(x, 0.0)
    # Fold (block_rows, 128) -> (8, 128) with elementwise (VPU) maxes only.
    r = r.reshape(-1, _SUB, _LANE).max(axis=0)
    o_ref[...] = jnp.maximum(o_ref[...], r[None])


def _max_relu_pallas(x2d, block_rows):
    rows = x2d.shape[0]
    num_tiles = rows // block_rows
    num_splits = 2 if (num_tiles >= 2 and num_tiles % 2 == 0) else 1
    tiles_per_split = num_tiles // num_splits

    partials = pl.pallas_call(
        _max_relu_kernel,
        out_shape=jax.ShapeDtypeStruct((num_splits, _SUB, _LANE), jnp.float32),
        grid_spec=pltpu.PrefetchScalarGridSpec(
            num_scalar_prefetch=0,
            grid=(num_splits, tiles_per_split),
            in_specs=[pl.BlockSpec(
                (block_rows, _LANE),
                lambda s, t: (s * tiles_per_split + t, 0))],
            out_specs=pl.BlockSpec((1, _SUB, _LANE), lambda s, t: (s, 0, 0)),
        ),
        compiler_params=pltpu.CompilerParams(
            dimension_semantics=("parallel", "arbitrary")),
    )(x2d)
    # Tiny final reduce (num_splits * 1024 elements) done by XLA.
    return jnp.max(partials)


# ----------------------------------------------------------------------------
# Kernel 2: out = clamp(relu(x) * inv_v_th, 0, 1)   (elementwise hot path)
# ----------------------------------------------------------------------------
def _spiking_norm_kernel(inv_vth_ref, x_ref, o_ref):
    inv_vth = inv_vth_ref[0, 0]                   # SMEM scalar
    x = x_ref[...].astype(jnp.float32)
    y = jnp.clip(jnp.maximum(x, 0.0) * inv_vth, 0.0, 1.0)
    o_ref[...] = y.astype(o_ref.dtype)            # write back in native dtype


def _clamp_scale_pallas(x2d, inv_vth_11, block_rows):
    rows = x2d.shape[0]
    num_tiles = rows // block_rows
    return pl.pallas_call(
        _spiking_norm_kernel,
        out_shape=jax.ShapeDtypeStruct(x2d.shape, x2d.dtype),
        grid_spec=pltpu.PrefetchScalarGridSpec(
            num_scalar_prefetch=0,
            grid=(num_tiles,),
            in_specs=[
                pl.BlockSpec(memory_space=pltpu.MemorySpace.SMEM),
                pl.BlockSpec((block_rows, _LANE), lambda i: (i, 0)),
            ],
            out_specs=pl.BlockSpec((block_rows, _LANE), lambda i: (i, 0)),
        ),
        compiler_params=pltpu.CompilerParams(
            dimension_semantics=("parallel",)),
    )(inv_vth_11, x2d)


# ----------------------------------------------------------------------------
# Module-equivalent wrapper
# ----------------------------------------------------------------------------
@functools.partial(jax.jit, static_argnames=("momentum", "eps", "sigmoid",
                                             "training"))
def spiking_norm_inv_forward(x, scale, running_max, *, momentum=0.1,
                             eps=1e-6, sigmoid=True, training=True):
    """Returns (out, new_running_max).  out has the same shape/dtype as x."""
    scale = jnp.asarray(scale, jnp.float32)
    running_max = jnp.asarray(running_max, jnp.float32)

    orig_shape = x.shape
    flat = x.reshape(-1)                          # native dtype kept through HBM
    n = flat.shape[0]
    rows, block_rows = _plan(n)
    padded_n = rows * _LANE
    if padded_n != n:
        # TODO(synk): mask the ragged tail in-kernel to avoid this full-copy pad.
        flat = jnp.pad(flat, (0, padded_n - n))
    x2d = flat.reshape(rows, _LANE)

    if training:
        max_relu = _max_relu_pallas(x2d, block_rows)
        new_running_max = ((1.0 - momentum) * running_max
                           + momentum * max_relu)
    else:
        new_running_max = running_max

    calc_scale = jax.nn.sigmoid(scale) if sigmoid else jnp.abs(scale)
    v_th = (new_running_max + eps) / calc_scale
    inv_vth = jnp.reshape(1.0 / v_th, (1, 1)).astype(jnp.float32)

    out2d = _clamp_scale_pallas(x2d, inv_vth, block_rows)
    out = out2d.reshape(-1)
    if padded_n != n:
        out = out[:n]
    return out.reshape(orig_shape), new_running_max


# ----------------------------------------------------------------------------
# Pure-JAX reference (mirrors the PyTorch module)
# ----------------------------------------------------------------------------
def _reference(x, scale, running_max, momentum=0.1, eps=1e-6, sigmoid=True,
               training=True):
    rm = jnp.asarray(running_max, jnp.float32)
    if training:
        rm = (1.0 - momentum) * rm + momentum * jnp.max(jax.nn.relu(x)).astype(jnp.float32)
    s = jax.nn.sigmoid(jnp.asarray(scale, jnp.float32)) if sigmoid else jnp.abs(scale)
    v_th = (rm + eps) / s
    out = jnp.clip(jax.nn.relu(x) / v_th, 0.0, 1.0).astype(x.dtype)
    return out, rm


if __name__ == "__main__":
    # Deterministic parameter init per module __init__:
    #   scale = Parameter([1.0]);  sigmoid=True -> scale *= 10.0
    #   running_max buffer = [1.0]
    scale = jnp.array(10.0, jnp.float32)
    running_max = jnp.array(1.0, jnp.float32)
    key = jax.random.PRNGKey(0)

    # Small NCHW case (single-block path).
    x_small = jax.random.normal(key, (2, 4, 16, 16), dtype=jnp.float32) * 2.0
    # Larger case exercising multi-tile + 2-way split reduction path.
    x_large = jax.random.normal(jax.random.PRNGKey(1), (4, 16, 64, 64),
                                dtype=jnp.float32) * 2.0

    for x in (x_small, x_large):
        out, new_rm = spiking_norm_inv_forward(
            x, scale, running_max, momentum=0.1, eps=1e-6, sigmoid=True,
            training=True)
        out = jax.block_until_ready(out)
        new_rm = jax.block_until_ready(new_rm)

        ref_out, ref_rm = _reference(x, scale, running_max)
        assert out.shape == x.shape and out.dtype == x.dtype
        assert jnp.allclose(out, ref_out, atol=1e-5, rtol=1e-5), "output mismatch"
        assert jnp.allclose(new_rm, ref_rm, atol=1e-5, rtol=1e-5), "running_max mismatch"

    print("KERNEL_OK")
</pallas_src>

<mosaic_0001>
module attributes {stable_mosaic.version = 11 : i64} {
  func.func @_max_relu_kernel(%arg0: i32, %arg1: i32, %arg2: memref<16x128xf32, #tpu.memory_space<vmem>>, %arg3: memref<1x8x128xf32, #tpu.memory_space<vmem>>) attributes {dimension_semantics = [#tpu.dimension_semantics<parallel>, #tpu.dimension_semantics<arbitrary>], iteration_bounds = array<i64: 1, 1>, scalar_prefetch = 0 : i64, scratch_operands = 0 : i64, tpu.core_type = #tpu.core_type<tc>, window_params = [{transform_indices = @transform_0, window_bounds = array<i64: 16, 128>}, {transform_indices = @transform_1, window_bounds = array<i64: 1, 8, 128>}]} {
    %c0_i32 = arith.constant 0 : i32
    %0 = arith.cmpi eq, %arg1, %c0_i32 : i32
    %1 = arith.extui %0 : i1 to i32
    %c0_i32_0 = arith.constant 0 : i32
    %2 = arith.cmpi ne, %1, %c0_i32_0 : i32
    scf.if %2 {
      %cst_9 = arith.constant 0.000000e+00 : f32
      %12 = vector.broadcast %cst_9 : f32 to vector<1x8x128xf32>
      %c0_10 = arith.constant 0 : index
      %c0_11 = arith.constant 0 : index
      %c0_12 = arith.constant 0 : index
      %13 = vector.load %arg3[%c0_10, %c0_11, %c0_12] : memref<1x8x128xf32, #tpu.memory_space<vmem>>, vector<1x8x128xf32>
      tpu.vector_store %arg3[%c0_10, %c0_11, %c0_12], %12 {strides = array<i32>} : memref<1x8x128xf32, #tpu.memory_space<vmem>>, vector<1x8x128xf32>,
    } else {
    }
    %c0 = arith.constant 0 : index
    %c0_1 = arith.constant 0 : index
    %3 = vector.load %arg2[%c0, %c0_1] : memref<16x128xf32, #tpu.memory_space<vmem>>, vector<16x128xf32>
    %cst = arith.constant 0.000000e+00 : f32
    %4 = vector.broadcast %cst : f32 to vector<16x128xf32>
    %5 = arith.maximumf %3, %4 : vector<16x128xf32>
    %6 = vector.shape_cast %5 : vector<16x128xf32> to vector<2x8x128xf32>
    %cst_2 = arith.constant dense<0xFF800000> : vector<8x128xf32>
    %7 = vector.multi_reduction <maximumf>, %6, %cst_2 [0] : vector<2x8x128xf32> to vector<8x128xf32>
    %c0_3 = arith.constant 0 : index
    %c0_4 = arith.constant 0 : index
    %c0_5 = arith.constant 0 : index
    %8 = vector.load %arg3[%c0_3, %c0_4, %c0_5] : memref<1x8x128xf32, #tpu.memory_space<vmem>>, vector<1x8x128xf32>
    %9 = vector.shape_cast %7 : vector<8x128xf32> to vector<1x8x128xf32>
    %10 = arith.maximumf %8, %9 : vector<1x8x128xf32>
    %c0_6 = arith.constant 0 : index
    %c0_7 = arith.constant 0 : index
    %c0_8 = arith.constant 0 : index
    %11 = vector.load %arg3[%c0_6, %c0_7, %c0_8] : memref<1x8x128xf32, #tpu.memory_space<vmem>>, vector<1x8x128xf32>
    tpu.vector_store %arg3[%c0_6, %c0_7, %c0_8], %10 {strides = array<i32>} : memref<1x8x128xf32, #tpu.memory_space<vmem>>, vector<1x8x128xf32>,
    return
  }
  func.func @transform_0(%arg0: i32, %arg1: i32) -> (i32, i32) {
    %c1_i32 = arith.constant 1 : i32
    %0 = arith.muli %arg0, %c1_i32 : i32
    %1 = arith.addi %0, %arg1 : i32
    %c0_i32 = arith.constant 0 : i32
    %c0_i32_0 = arith.constant 0 : i32
    return %1, %c0_i32 : i32, i32
  }
  func.func @transform_1(%arg0: i32, %arg1: i32) -> (i32, i32, i32) {
    %c0_i32 = arith.constant 0 : i32
    %c0_i32_0 = arith.constant 0 : i32
    %c0_i32_1 = arith.constant 0 : i32
    return %arg0, %c0_i32, %c0_i32_0 : i32, i32, i32
  }
}

module attributes {stable_mosaic.version = 11 : i64} {
  func.func @_spiking_norm_kernel(%arg0: i32, %arg1: memref<1x1xf32, #tpu.memory_space<smem>>, %arg2: memref<16x128xf32, #tpu.memory_space<vmem>>, %arg3: memref<16x128xf32, #tpu.memory_space<vmem>>) attributes {dimension_semantics = [#tpu.dimension_semantics<parallel>], iteration_bounds = array<i64: 1>, scalar_prefetch = 0 : i64, scratch_operands = 0 : i64, tpu.core_type = #tpu.core_type<tc>, window_params = [{transform_indices = @transform_0, window_bounds = array<i64: 1, 1>}, {transform_indices = @transform_1, window_bounds = array<i64: 16, 128>}, {transform_indices = @transform_2, window_bounds = array<i64: 16, 128>}]} {
    %c0 = arith.constant 0 : index
    %c0_0 = arith.constant 0 : index
    %0 = memref.load %arg1[%c0, %c0_0] : memref<1x1xf32, #tpu.memory_space<smem>>
    %c0_1 = arith.constant 0 : index
    %c0_2 = arith.constant 0 : index
    %1 = vector.load %arg2[%c0_1, %c0_2] : memref<16x128xf32, #tpu.memory_space<vmem>>, vector<16x128xf32>
    %cst = arith.constant 0.000000e+00 : f32
    %2 = vector.broadcast %cst : f32 to vector<16x128xf32>
    %3 = arith.maximumf %1, %2 : vector<16x128xf32>
    %4 = vector.broadcast %0 : f32 to vector<16x128xf32>
    %5 = arith.mulf %3, %4 : vector<16x128xf32>
    %cst_3 = arith.constant 0.000000e+00 : f32
    %cst_4 = arith.constant 1.000000e+00 : f32
    %6 = vector.broadcast %cst_3 : f32 to vector<16x128xf32>
    %7 = arith.maximumf %6, %5 : vector<16x128xf32>
    %8 = vector.broadcast %cst_4 : f32 to vector<16x128xf32>
    %9 = arith.minimumf %8, %7 : vector<16x128xf32>
    %c0_5 = arith.constant 0 : index
    %c0_6 = arith.constant 0 : index
    %10 = vector.load %arg3[%c0_5, %c0_6] : memref<16x128xf32, #tpu.memory_space<vmem>>, vector<16x128xf32>
    tpu.vector_store %arg3[%c0_5, %c0_6], %9 {strides = array<i32>} : memref<16x128xf32, #tpu.memory_space<vmem>>, vector<16x128xf32>,
    return
  }
  func.func @transform_0(%arg0: i32) -> (i32, i32) {
    %c0_i32 = arith.constant 0 : i32
    %c0_i32_0 = arith.constant 0 : i32
    %c0_i32_1 = arith.constant 0 : i32
    return %c0_i32, %c0_i32_0 : i32, i32
  }
  func.func @transform_1(%arg0: i32) -> (i32, i32) {
    %c0_i32 = arith.constant 0 : i32
    %c0_i32_0 = arith.constant 0 : i32
    return %arg0, %c0_i32 : i32, i32
  }
  func.func @transform_2(%arg0: i32) -> (i32, i32) {
    %c0_i32 = arith.constant 0 : i32
    %c0_i32_0 = arith.constant 0 : i32
    return %arg0, %c0_i32 : i32, i32
  }
}

</mosaic_0001>

<llo_original>
// kernel: spiking_norm_inv_forward.2
$region0: #{spiking_norm_inv_forward.2}
  #allocation0 [shape = 'u32[]', space=smem, size = 0x4, offset = 0x4, fixed_abs, tag = 'smem constant byte address 0x4 - core index']
  #allocation1 [shape = 'u32[144,128]{1,0:T(1,128)}', space=vmem, size = 0x12000, scoped, tag = 'internal scratch']
  %s0 = inlined_call_operand.vmem [shape: f32[16,128], index: 0, kind: input, shape index: {}]
  %s1 = inlined_call_operand.vmem [shape: f32[1,8,128], index: 1, kind: output, shape index: {}]
  %s2 = sld [smem:[#allocation0]]
  $region18: #{spiking_norm_inv_forward.2} parent=0
    _
  %s4 = ssub.s32 1, %s2
  %s5 = scalar_select 0, %s4, %s2
  // Predicated region
  $region2: #{spiking_norm_inv_forward.2} parent=0 // pred_check
    _
  $region3: #{spiking_norm_inv_forward.2} parent=0 // pred_check_branch
    %7 = sbr.rel (0) target = $region5
  $region4: #{spiking_norm_inv_forward.2} parent=0 // pred_region
    %s8 = sadd.s32 0, 0
    %s9 = smul.u32 2, %s8
    %p10 = scmp.lt.s32.totalorder %s9, 1
    %s11 = scalar_select %p10, %s9, 1
    %s12 = smul.addr %s11, 8
    %s13 = scalar_lea.vmem %s0, %s12
    %s14 = sadd.s32 0, 0
    %s15 = smul.u32 2, %s14
  $region5: #{spiking_norm_inv_forward.2} parent=0 // pred_fallthru
    _
  %s16 = sadd.s32 0, 0
  %s17 = smul.u32 2, %s16
  %p18 = scmp.lt.s32.totalorder %s17, 1
  %s19 = scalar_select %p18, %s17, 1
  %s20 = smul.addr %s19, 8
  %s21 = scalar_lea.vmem %s0, %s20
  %s22 = sadd.s32 0, 0
  %s23 = smul.u32 2, %s22
  %p24 = scmp.lt.s32.totalorder %s23, 1
  %s25 = scalar_select %p24, %s23, 1
  %s26 = smul.addr %s25, 8
  %s27 = scalar_lea.vmem %s0, %s26
  %s28 = sadd.s32 0, 0
  %s29 = smul.u32 2, %s28
  %p30 = scmp.eq.s32.totalorder 0, 0
  // Predicated region
  $region6: #{spiking_norm_inv_forward.2} parent=0 // pred_check
    %p31 = pneg %p30
  $region7: #{spiking_norm_inv_forward.2} parent=0 // pred_check_branch
    %33 = sbr.rel (%p31) target = $region9
  $region8: #{spiking_norm_inv_forward.2} parent=0 // pred_region
    %34 = vst [vmem:[%s1] sm:$0xff] 0.0
  $region9: #{spiking_norm_inv_forward.2} parent=0 // pred_fallthru
    _
  %v35 = vld [vmem:[%s27] sm:$0xff]
  %v36 = vld [vmem:[%s27 + $0x8] sm:$0xff]
  %v37 = vmax.f32 %v35, 0.0
  %v38 = vmax.f32 %v36, 0.0
  %v39 = vmax.f32 %v37, %v38
  %v40 = vld [vmem:[%s1] sm:$0xff]
  %v41 = vmax.f32 %v40, %v39
  %42 = vst [vmem:[%s1] sm:$0xff] %v41
  // Predicated region
  $region10: #{spiking_norm_inv_forward.2} parent=0 // pred_check
    _
  $region11: #{spiking_norm_inv_forward.2} parent=0 // pred_check_branch
    %44 = sbr.rel (0) target = $region13
  $region12: #{spiking_norm_inv_forward.2} parent=0 // pred_region
    _
  $region13: #{spiking_norm_inv_forward.2} parent=0 // pred_fallthru
    _
  // Predicated region
  $region14: #{spiking_norm_inv_forward.2} parent=0 // pred_check
    _
  $region15: #{spiking_norm_inv_forward.2} parent=0 // pred_check_branch
    %46 = sbr.rel (0) target = $region17
  $region16: #{spiking_norm_inv_forward.2} parent=0 // pred_region
    _
  $region17: #{spiking_norm_inv_forward.2} parent=0 // pred_fallthru
    _

// kernel: spiking_norm_inv_forward.3
$region0: #{spiking_norm_inv_forward.3}
  #allocation0 [shape = 'u32[]', space=smem, size = 0x4, offset = 0x4, fixed_abs, tag = 'smem constant byte address 0x4 - core index']
  #allocation1 [shape = 'u32[144,128]{1,0:T(1,128)}', space=vmem, size = 0x12000, scoped, tag = 'internal scratch']
  #allocation2 [shape = 'f32[1,1]{1,0:T(1,128)S(6)}', space=smem, size = 0x200, scoped, tag = 'scoped memory for spiking_norm_inv_forward.3']
  %s0 = inlined_call_operand.<no memory space> [shape: f32[1,1], index: 0, kind: input, shape index: {}]
  %s1 = inlined_call_operand.vmem [shape: f32[16,128], index: 1, kind: input, shape index: {}]
  %s2 = inlined_call_operand.vmem [shape: f32[16,128], index: 2, kind: output, shape index: {}]
  %s3 = sld [smem:[#allocation0]]
  $region18: #{spiking_norm_inv_forward.3} parent=0
    _
  %s5 = ssub.s32 1, %s3
  %s6 = scalar_select 0, %s5, %s3
  %7 = sst [smem:[#allocation2]] %s0
  // Predicated region
  $region2: #{spiking_norm_inv_forward.3} parent=0 // pred_check
    _
  $region3: #{spiking_norm_inv_forward.3} parent=0 // pred_check_branch
    %9 = sbr.rel (0) target = $region5
  $region4: #{spiking_norm_inv_forward.3} parent=0 // pred_region
    _
  $region5: #{spiking_norm_inv_forward.3} parent=0 // pred_fallthru
    _
  // Predicated region
  $region6: #{spiking_norm_inv_forward.3} parent=0 // pred_check
    _
  $region7: #{spiking_norm_inv_forward.3} parent=0 // pred_check_branch
    %11 = sbr.rel (0) target = $region9
  $region8: #{spiking_norm_inv_forward.3} parent=0 // pred_region
    _
  $region9: #{spiking_norm_inv_forward.3} parent=0 // pred_fallthru
    _
  %s12 = sld [smem:[#allocation2]]
  %v13 = vld [vmem:[%s1] sm:$0xff]
  %v14 = vld [vmem:[%s1 + $0x8] sm:$0xff]
  %v15 = vmax.f32 %v13, 0.0
  %v16 = vmax.f32 %v14, 0.0
  %v17 = vstv %s12
  %v18 = vmul.f32 %v15, %v17
  %v19 = vmul.f32 %v16, %v17
  %v20 = vmax.f32 %v18, 0.0
  %v21 = vmax.f32 %v19, 0.0
  %v22 = vmin.f32 %v20, 1.0
  %v23 = vmin.f32 %v21, 1.0
  %24 = vst [vmem:[%s2] sm:$0xff] %v22
  %25 = vst [vmem:[%s2 + $0x8] sm:$0xff] %v23
  // Predicated region
  $region10: #{spiking_norm_inv_forward.3} parent=0 // pred_check
    _
  $region11: #{spiking_norm_inv_forward.3} parent=0 // pred_check_branch
    %27 = sbr.rel (0) target = $region13
  $region12: #{spiking_norm_inv_forward.3} parent=0 // pred_region
    _
  $region13: #{spiking_norm_inv_forward.3} parent=0 // pred_fallthru
    _
  // Predicated region
  $region14: #{spiking_norm_inv_forward.3} parent=0 // pred_check
    _
  $region15: #{spiking_norm_inv_forward.3} parent=0 // pred_check_branch
    %29 = sbr.rel (0) target = $region17
  $region16: #{spiking_norm_inv_forward.3} parent=0 // pred_region
    _
  $region17: #{spiking_norm_inv_forward.3} parent=0 // pred_fallthru
    _

</llo_original>
